<compile_context>
chip_gen: v7x
topology: tpu7x:2x2x1
jax: 0.10.0
libtpu: 0.0.40
codegen_flags: <defaults>
</compile_context>

<pallas_src>
import jax
import jax.numpy as jnp
from jax import lax
from jax.experimental import pallas as pl
from jax.experimental.pallas import tpu as pltpu


def _logreg_kernel(b_ref, x_ref, w_ref, o_ref):
    # b_ref: SMEM (1, 1) f32 bias; x_ref: VMEM (tm, D) batch tile;
    # w_ref: VMEM (1, D) resident weight row; o_ref: VMEM (tm, 1) f32 output.
    xw = x_ref[...].astype(jnp.float32) * w_ref[...].astype(jnp.float32)  # VPU
    z = jnp.sum(xw, axis=-1, keepdims=True) + b_ref[0, 0]                 # XLU lane-reduce
    # sigmoid(z) = 0.5 * tanh(z / 2) + 0.5   (tanh rides the EUP slot, exact f32)
    o_ref[...] = (0.5 * jnp.tanh(0.5 * z) + 0.5).astype(o_ref.dtype)


def _round_up(n, m):
    return ((n + m - 1) // m) * m


def _vmem_bytes():
    try:
        return int(pltpu.get_tpu_info().vmem_capacity_bytes)
    except Exception:
        return 64 * 1024 * 1024  # conservative (v7x-sized) fallback


def _pick_tile(batch, d, itemsize):
    vmem = _vmem_bytes()
    # ~40% of VMEM for the two double-buffered x tiles: ~25 MiB on v7x (64 MiB
    # VMEM, high HBM BW -> big tiles matter most), ~51 MiB on v5e/v6e (128 MiB).
    budget = min((vmem * 2) // 5, 96 * 1024 * 1024)
    tm = (budget // (2 * d * itemsize)) // 128 * 128
    tm = max(128, min(tm, 16384))
    # Keep >= 4 grid steps when the batch allows it so both v7x TensorCores
    # get work under dimension_semantics=("parallel",); floor at one 128-row tile.
    tm = min(tm, max(128, _round_up(pl.cdiv(batch, 4), 128)))
    return tm


def logistic_regression(x, w, b, *, tm=None):
    """x: [B, D]; w: [1, D] (PyTorch nn.Linear layout); b: scalar -> sigmoid(x @ w.T + b) as [B, 1] f32.

    Works for f32 or bf16 x/w (math is done in f32 inside the kernel).
    """
    B, D = x.shape
    w = jnp.reshape(w, (1, D))
    itemsize = jnp.dtype(x.dtype).itemsize
    if tm is None:
        tm = _pick_tile(B, D, itemsize)

    grid = (pl.cdiv(B, tm),)  # ragged last block handled by Pallas (clipped DMAs)
    b_smem = jnp.reshape(b, (1, 1)).astype(jnp.float32)

    vmem = _vmem_bytes()
    vmem_limit = max(32 * 1024 * 1024,
                     min(vmem - 16 * 1024 * 1024, 100 * 1024 * 1024))

    cost = pl.CostEstimate(
        flops=2 * B * D,
        transcendentals=B,
        bytes_accessed=B * D * itemsize + 4 * B + 4 * D + 4,
    )

    out = pl.pallas_call(
        _logreg_kernel,
        out_shape=jax.ShapeDtypeStruct((B, 1), jnp.float32),
        grid=grid,
        in_specs=[
            pl.BlockSpec(memory_space=pltpu.SMEM),          # bias scalar
            pl.BlockSpec((tm, D), lambda i: (i, 0)),        # x batch tile (pipelined)
            pl.BlockSpec((1, D), lambda i: (0, 0)),         # weight row, resident
        ],
        out_specs=pl.BlockSpec((tm, 1), lambda i: (i, 0)),  # per-tile logits column
        compiler_params=pltpu.CompilerParams(
            dimension_semantics=("parallel",),
            vmem_limit_bytes=vmem_limit,
        ),
        cost_estimate=cost,
    )(b_smem, x, w)

    return out  # already (B, 1); no padding was introduced


if __name__ == "__main__":
    key = jax.random.PRNGKey(0)
    kx, kw, kb = jax.random.split(key, 3)

    # input_size = 128; B not a multiple of the 128-row tile -> exercises the
    # no-pad ragged last block path (auto tile picker gives tm=128, grid=2).
    B, D = 200, 128
    x = jax.random.normal(kx, (B, D), dtype=jnp.float32)

    # Deterministic params mimicking nn.Linear default U(-1/sqrt(D), 1/sqrt(D)).
    bound = 1.0 / jnp.sqrt(jnp.float32(D))
    w = jax.random.uniform(kw, (1, D), minval=-bound, maxval=bound, dtype=jnp.float32)
    b = jax.random.uniform(kb, (), minval=-bound, maxval=bound, dtype=jnp.float32)

    out = jax.block_until_ready(logistic_regression(x, w, b))

    # Reference in plain JAX.
    ref = jax.nn.sigmoid(jnp.dot(x, w.T, precision=lax.Precision.HIGHEST) + b)
    assert out.shape == (B, 1)
    assert jnp.allclose(out, ref, atol=1e-5, rtol=1e-5), "mismatch vs reference"

    print("KERNEL_OK")
</pallas_src>

<mosaic_0001>
module attributes {stable_mosaic.version = 11 : i64} {
  func.func @_logreg_kernel(%arg0: i32, %arg1: memref<1x1xf32, #tpu.memory_space<smem>>, %arg2: memref<128x128xf32, #tpu.memory_space<vmem>>, %arg3: memref<1x128xf32, #tpu.memory_space<vmem>>, %arg4: memref<128x1xf32, #tpu.memory_space<vmem>>) attributes {dimension_semantics = [#tpu.dimension_semantics<parallel>], iteration_bounds = array<i64: 2>, scalar_prefetch = 0 : i64, scratch_operands = 0 : i64, tpu.core_type = #tpu.core_type<tc>, window_params = [{transform_indices = @transform_0, window_bounds = array<i64: 1, 1>}, {transform_indices = @transform_1, window_bounds = array<i64: 128, 128>}, {pipeline_mode = #tpu.pipeline_mode<synchronous>, transform_indices = @transform_2, window_bounds = array<i64: 1, 128>}, {transform_indices = @transform_3, window_bounds = array<i64: 128, 1>}]} {
    %c0 = arith.constant 0 : index
    %c0_0 = arith.constant 0 : index
    %0 = vector.load %arg2[%c0, %c0_0] : memref<128x128xf32, #tpu.memory_space<vmem>>, vector<128x128xf32>
    %c0_1 = arith.constant 0 : index
    %c0_2 = arith.constant 0 : index
    %1 = vector.load %arg3[%c0_1, %c0_2] : memref<1x128xf32, #tpu.memory_space<vmem>>, vector<1x128xf32>
    %2 = vector.broadcast %1 : vector<1x128xf32> to vector<128x128xf32>
    %3 = arith.mulf %0, %2 : vector<128x128xf32>
    %cst = arith.constant dense<0.000000e+00> : vector<128xf32>
    %4 = vector.multi_reduction <add>, %3, %cst [1] : vector<128x128xf32> to vector<128xf32>
    %5 = vector.shape_cast %4 : vector<128xf32> to vector<128x1xf32>
    %c0_3 = arith.constant 0 : index
    %c0_4 = arith.constant 0 : index
    %6 = memref.load %arg1[%c0_3, %c0_4] : memref<1x1xf32, #tpu.memory_space<smem>>
    %7 = vector.broadcast %6 : f32 to vector<128x1xf32>
    %8 = arith.addf %5, %7 : vector<128x1xf32>
    %cst_5 = arith.constant 5.000000e-01 : f32
    %9 = vector.broadcast %cst_5 : f32 to vector<128x1xf32>
    %10 = arith.mulf %9, %8 : vector<128x1xf32>
    %11 = math.tanh %10 : vector<128x1xf32>
    %cst_6 = arith.constant 5.000000e-01 : f32
    %12 = vector.broadcast %cst_6 : f32 to vector<128x1xf32>
    %13 = arith.mulf %12, %11 : vector<128x1xf32>
    %cst_7 = arith.constant 5.000000e-01 : f32
    %14 = vector.broadcast %cst_7 : f32 to vector<128x1xf32>
    %15 = arith.addf %13, %14 : vector<128x1xf32>
    %c0_8 = arith.constant 0 : index
    %c0_9 = arith.constant 0 : index
    %16 = vector.load %arg4[%c0_8, %c0_9] : memref<128x1xf32, #tpu.memory_space<vmem>>, vector<128x1xf32>
    tpu.vector_store %arg4[%c0_8, %c0_9], %15 {strides = array<i32>} : memref<128x1xf32, #tpu.memory_space<vmem>>, vector<128x1xf32>,
    return
  }
  func.func @transform_0(%arg0: i32) -> (i32, i32) {
    %c0_i32 = arith.constant 0 : i32
    %c0_i32_0 = arith.constant 0 : i32
    %c0_i32_1 = arith.constant 0 : i32
    return %c0_i32, %c0_i32_0 : i32, i32
  }
  func.func @transform_1(%arg0: i32) -> (i32, i32) {
    %c0_i32 = arith.constant 0 : i32
    %c0_i32_0 = arith.constant 0 : i32
    return %arg0, %c0_i32 : i32, i32
  }
  func.func @transform_2(%arg0: i32) -> (i32, i32) {
    %c0_i32 = arith.constant 0 : i32
    %c0_i32_0 = arith.constant 0 : i32
    %c0_i32_1 = arith.constant 0 : i32
    return %c0_i32, %c0_i32_0 : i32, i32
  }
  func.func @transform_3(%arg0: i32) -> (i32, i32) {
    %c0_i32 = arith.constant 0 : i32
    %c0_i32_0 = arith.constant 0 : i32
    return %arg0, %c0_i32 : i32, i32
  }
}

</mosaic_0001>

<llo_original>
// kernel: tpu_custom_call.1
$region0: #{tpu_custom_call.1}
  #allocation0 [shape = 'u32[]', space=smem, size = 0x4, offset = 0x4, fixed_abs, tag = 'smem constant byte address 0x4 - core index']
  #allocation1 [shape = 'u32[144,128]{1,0:T(1,128)}', space=vmem, size = 0x12000, scoped, tag = 'internal scratch']
  #allocation2 [shape = 'f32[1,1]{1,0:T(1,128)S(6)}', space=smem, size = 0x200, scoped, tag = 'scoped memory for tpu_custom_call.1']
  %s0 = inlined_call_operand.<no memory space> [shape: f32[1,1], index: 0, kind: input, shape index: {}]
  %s1 = inlined_call_operand.hbm [shape: f32[200,128], index: 1, kind: input, shape index: {}]
  %s2 = inlined_call_operand.vmem [shape: f32[1,128], index: 2, kind: input, shape index: {}]
  %s3 = inlined_call_operand.vmem [shape: f32[200,1], index: 3, kind: output, shape index: {}]
  %s4 = sld [smem:[#allocation0]]
  $region97: #{tpu_custom_call.1} parent=0
    _
  %s6 = ssub.s32 1, %s4
  %s7 = scalar_select 0, %s6, %s4
  %8 = sst [smem:[#allocation2]] %s0
  $region1: #{tpu_custom_call.1} parent=0
    #allocation3 [shape = 'u8[131072]{0}', space=vmem, size = 0x20000, scoped, tag = 'input window, operand 1']
    #allocation4 [shape = 's32[2]{0}', space=sflag, size = 0x8, scoped, tag = 'scoped memory for tpu_custom_call.1']
    #allocation5 [shape = 'u8[131072]{0}', space=vmem, size = 0x20000, scoped, tag = 'output window, operand 0']
    %9 = vsyncpa [#allocation4], 0
    %s10 = scalar_lea.sflag [#allocation4], 1
    %11 = vsyncpa %s10, 0
    loop: start=0, step=1, limit=4
    $region2: #{tpu_custom_call.1} parent=1 // loop_pre_header
      _
    $region3: #{tpu_custom_call.1} parent=1 // loop_header
      %s13 = sphi 0, %s17
      %p14 = scmp.ge.s32.totalorder %s13, 4
      %s21 = sphi 0, %s21
      %s23 = sphi 0, %s21
      %s24 = sphi 0, %s23
      %s38 = sphi 0, %s24
      %s44 = sphi 0, %s46
      %s47 = sphi 0, %s44
      %s48 = sphi 0, %s47
      %s64 = sphi 0, %s48
      %s68 = sphi 0, %s68
      %s70 = sphi 0, %s68
      %s71 = sphi 0, %s70
      %s85 = sphi 0, %s71
      %s91 = sphi 0, %s93
      %s94 = sphi 0, %s91
      %s95 = sphi 0, %s94
      %s111 = sphi 0, %s95
    $region4: #{tpu_custom_call.1} parent=1 // loop_header_branch
      %16 = sbr.rel (%p14) target = $region8
    $region5: #{tpu_custom_call.1} parent=1 // loop_body
      %s18 = ssub.s32 %s13, 1
      %s19 = ssub.s32 %s13, 2
      %s20 = sadd.s32 %s13, 1
      %s22 = sadd.s32 %s21, 1
      %p25 = scmp.eq.s32.totalorder %s13, 1
      %p26 = scmp.ne.s32.totalorder %s21, %s23
      %p27 = scmp.eq.s32.totalorder %s13, 0
      %p28 = por %p26, %p27
      %p29 = scmp.ne.s32.totalorder %s21, %s23
      %p30 = scmp.eq.s32.totalorder %s18, 1
      %p31 = por %p29, %p30
      %p32 = scmp.ne.s32.totalorder %s23, %s24
      %p33 = scmp.eq.s32.totalorder %s18, 0
      %p34 = por %p32, %p33
      %p35 = scmp.ne.s32.totalorder %s23, %s24
      %p36 = scmp.eq.s32.totalorder %s19, 1
      %p37 = por %p35, %p36
      %p39 = scmp.ne.s32.totalorder %s24, %s38
      %p40 = scmp.eq.s32.totalorder %s19, 0
      %p41 = por %p39, %p40
      %s42 = ssub.s32 %s13, %s20
      %p43 = scmp.eq.s32.totalorder %s42, 0
      %s45 = sadd.s32 %s44, 1
      %s46 = scalar_select %p43, %s44, %s45
      %p49 = pneg %p43
      %p50 = scmp.eq.s32.totalorder %s13, 1
      %p51 = por %p49, %p50
      %p52 = scmp.ne.s32.totalorder %s44, %s47
      %p53 = scmp.eq.s32.totalorder %s13, 0
      %p54 = por %p52, %p53
      %p55 = scmp.ne.s32.totalorder %s44, %s47
      %p56 = scmp.eq.s32.totalorder %s18, 1
      %p57 = por %p55, %p56
      %p58 = scmp.ne.s32.totalorder %s47, %s48
      %p59 = scmp.eq.s32.totalorder %s18, 0
      %p60 = por %p58, %p59
      %p61 = scmp.ne.s32.totalorder %s47, %s48
      %p62 = scmp.eq.s32.totalorder %s19, 1
      %p63 = por %p61, %p62
      %p65 = scmp.ne.s32.totalorder %s48, %s64
      %p66 = scmp.eq.s32.totalorder %s19, 0
      %p67 = por %p65, %p66
      %s69 = sadd.s32 %s68, 1
      %p72 = scmp.eq.s32.totalorder %s13, 1
      %p73 = scmp.ne.s32.totalorder %s68, %s70
      %p74 = scmp.eq.s32.totalorder %s13, 0
      %p75 = por %p73, %p74
      %p76 = scmp.ne.s32.totalorder %s68, %s70
      %p77 = scmp.eq.s32.totalorder %s18, 1
      %p78 = por %p76, %p77
      %p79 = scmp.ne.s32.totalorder %s70, %s71
      %p80 = scmp.eq.s32.totalorder %s18, 0
      %p81 = por %p79, %p80
      %p82 = scmp.ne.s32.totalorder %s70, %s71
      %p83 = scmp.eq.s32.totalorder %s19, 1
      %p84 = por %p82, %p83
      %p86 = scmp.ne.s32.totalorder %s71, %s85
      %p87 = scmp.eq.s32.totalorder %s19, 0
      %p88 = por %p86, %p87
      %s89 = ssub.s32 %s13, %s20
      %p90 = scmp.eq.s32.totalorder %s89, 0
      %s92 = sadd.s32 %s91, 1
      %s93 = scalar_select %p90, %s91, %s92
      %p96 = pneg %p90
      %p97 = scmp.eq.s32.totalorder %s13, 1
      %p98 = por %p96, %p97
      %p99 = scmp.ne.s32.totalorder %s91, %s94
      %p100 = scmp.eq.s32.totalorder %s13, 0
      %p101 = por %p99, %p100
      %p102 = scmp.ne.s32.totalorder %s91, %s94
      %p103 = scmp.eq.s32.totalorder %s18, 1
      %p104 = por %p102, %p103
      %p105 = scmp.ne.s32.totalorder %s94, %s95
      %p106 = scmp.eq.s32.totalorder %s18, 0
      %p107 = por %p105, %p106
      %p108 = scmp.ne.s32.totalorder %s94, %s95
      %p109 = scmp.eq.s32.totalorder %s19, 1
      %p110 = por %p108, %p109
      %p112 = scmp.ne.s32.totalorder %s95, %s111
      %p113 = scmp.eq.s32.totalorder %s19, 0
      %p114 = por %p112, %p113
      %p115 = scmp.le.s32.totalorder 1, %s13
      %p116 = scmp.lt.s32.totalorder %s13, 3
      %p117 = pnand %p115, %p116
      %p118 = pneg %p117
      // Predicated region
      $region9: #{tpu_custom_call.1} parent=5 // pred_check
        _
      $region10: #{tpu_custom_call.1} parent=5 // pred_check_branch
        %120 = sbr.rel (%p117) target = $region12
      $region11: #{tpu_custom_call.1} parent=5 // pred_region
        %s121 = ssub.s32 %s13, 1
        // Predicated region
        $region13: #{tpu_custom_call.1} parent=11 // pred_check
          %p122 = pneg %p34
        $region14: #{tpu_custom_call.1} parent=11 // pred_check_branch
          %124 = sbr.rel (%p122) target = $region16
        $region15: #{tpu_custom_call.1} parent=11 // pred_region
          _
        $region16: #{tpu_custom_call.1} parent=11 // pred_fallthru
          _
        // Predicated region
        $region17: #{tpu_custom_call.1} parent=11 // pred_check
          %p125 = pneg %p81
        $region18: #{tpu_custom_call.1} parent=11 // pred_check_branch
          %127 = sbr.rel (%p125) target = $region20
        $region19: #{tpu_custom_call.1} parent=11 // pred_region
          _
        $region20: #{tpu_custom_call.1} parent=11 // pred_fallthru
          _
      $region12: #{tpu_custom_call.1} parent=5 // pred_fallthru
        _
      %p128 = scmp.lt.s32.totalorder %s13, 2
      // Predicated region
      $region21: #{tpu_custom_call.1} parent=5 // pred_check
        %p129 = pneg %p128
      $region22: #{tpu_custom_call.1} parent=5 // pred_check_branch
        %131 = sbr.rel (%p129) target = $region24
      $region23: #{tpu_custom_call.1} parent=5 // pred_region
        // Predicated region
        $region25: #{tpu_custom_call.1} parent=23 // pred_check
          %p132 = pneg %p54
        $region26: #{tpu_custom_call.1} parent=23 // pred_check_branch
          %134 = sbr.rel (%p132) target = $region28
        $region27: #{tpu_custom_call.1} parent=23 // pred_region
          %s135 = sand.u32 %s44, 1
          %s136 = scalar_lea.sflag [#allocation4], %s135
          %s137 = sand.u32 %s44, 1
          %s138 = smul.addr %s137, 128
          %s139 = scalar_lea.vmem [#allocation3], %s138
          %s140 = smul.u32 16, %s13
          %s141 = ssub.s32 25, %s140
          %p142 = scmp.lt.s32.totalorder %s141, 16
          %s143 = scalar_select %p142, %s141, 16
          %s144 = smul.u32 128, %s143
          %s146 = ssub.s32 2048, %s144
          %147 = vsyncadd %s136, %s146
          %p148 = scmp.ne.s32.totalorder 0, %s144
          %s149 = smul.addr %s140, 128
          %s150 = scalar_lea.hbm %s1, %s149
          %s151 = smul.u32 8, %s143
          %s152 = sshll.u32 %s139, 4
          %s153 = int_to_ptr.vmem [resolvable:$true] %s152
          %s154 = sshll.u32 %s151, 4
          %158 = dma.hbm_to_vmem [thread:$0]  (%p148), %s150, %s154, %s153, %s136, 128, 128, 8
        $region28: #{tpu_custom_call.1} parent=23 // pred_fallthru
          _
      $region24: #{tpu_custom_call.1} parent=5 // pred_fallthru
        _
      %p159 = scmp.le.s32.totalorder 1, %s13
      %p160 = scmp.lt.s32.totalorder %s13, 3
      %p161 = pnand %p159, %p160
      %p162 = pneg %p161
      // Predicated region
      $region29: #{tpu_custom_call.1} parent=5 // pred_check
        _
      $region30: #{tpu_custom_call.1} parent=5 // pred_check_branch
        %164 = sbr.rel (%p161) target = $region32
      $region31: #{tpu_custom_call.1} parent=5 // pred_region
        %s165 = ssub.s32 %s13, 1
        %s166 = sand.u32 %s47, 1
        %s167 = scalar_lea.sflag [#allocation4], %s166
        %s168 = sand.u32 %s47, 1
        %s169 = smul.addr %s168, 128
        %s170 = scalar_lea.vmem [#allocation3], %s169
        // Predicated region
        $region33: #{tpu_custom_call.1} parent=31 // pred_check
          %p171 = pneg %p60
        $region34: #{tpu_custom_call.1} parent=31 // pred_check_branch
          %173 = sbr.rel (%p171) target = $region36
        $region35: #{tpu_custom_call.1} parent=31 // pred_region
          %174 = dma.done %s167, 2048
        $region36: #{tpu_custom_call.1} parent=31 // pred_fallthru
          _
        %p175 = pneg %p34
        %p176 = pneg %p31
        %s177 = sand.u32 %s47, 1
        %s178 = scalar_lea.sflag [#allocation4], %s177
        %s179 = sand.u32 %s47, 1
        %s180 = smul.addr %s179, 128
        %s181 = scalar_lea.vmem [#allocation3], %s180
        %p182 = pneg %p60
        %p183 = pneg %p57
        %p184 = pneg %p81
        %p185 = pneg %p78
        %p186 = pneg %p107
        %p187 = pneg %p104
        %s188 = sand.u32 %s94, 1
        %s189 = sand.u32 %s94, 1
        %s190 = smul.addr %s189, 128
        %s191 = scalar_lea.vmem [#allocation5], %s190
        %s192 = smul.u32 16, %s18
        %s193 = ssub.s32 25, %s192
        %p194 = scmp.lt.s32.totalorder %s193, 16
        %s195 = scalar_select %p194, %s193, 16
        %s196 = smul.u32 128, %s195
        %s197 = smul.u32 16, %s18
        %s198 = ssub.s32 25, %s197
        %p199 = scmp.lt.s32.totalorder %s198, 16
        %s200 = scalar_select %p199, %s198, 16
        %s201 = smul.u32 128, %s200
        %v202 = vld [vmem:[%s170] sm:$0xff]
        %v203 = vld [vmem:[%s170 + $0x8] sm:$0xff]
        %v204 = vld [vmem:[%s170 + $0x10] sm:$0xff]
        %v205 = vld [vmem:[%s170 + $0x18] sm:$0xff]
        %v206 = vld [vmem:[%s170 + $0x20] sm:$0xff]
        %v207 = vld [vmem:[%s170 + $0x28] sm:$0xff]
        %v208 = vld [vmem:[%s170 + $0x30] sm:$0xff]
        %v209 = vld [vmem:[%s170 + $0x38] sm:$0xff]
        %v210 = vld [vmem:[%s170 + $0x40] sm:$0xff]
        %v211 = vld [vmem:[%s170 + $0x48] sm:$0xff]
        %v212 = vld [vmem:[%s170 + $0x50] sm:$0xff]
        %v213 = vld [vmem:[%s170 + $0x58] sm:$0xff]
        %v214 = vld [vmem:[%s170 + $0x60] sm:$0xff]
        %v215 = vld [vmem:[%s170 + $0x68] sm:$0xff]
        %v216 = vld [vmem:[%s170 + $0x70] sm:$0xff]
        %v217 = vld [vmem:[%s170 + $0x78] sm:$0xff]
        %v218 = vld [vmem:[%s2] sm:$0x1]
        %v220 = vlaneseq
        %v221 = vshrl.u32 %v220, 7
        %v222 = vsub.s32 0, %v221
        %v223 = vrot.slane %v218, %v222
        %v225 = vmul.f32 %v202, %v223
        %v226 = vmul.f32 %v203, %v223
        %v227 = vmul.f32 %v204, %v223
        %v228 = vmul.f32 %v205, %v223
        %v229 = vmul.f32 %v206, %v223
        %v230 = vmul.f32 %v207, %v223
        %v231 = vmul.f32 %v208, %v223
        %v232 = vmul.f32 %v209, %v223
        %v233 = vmul.f32 %v210, %v223
        %v234 = vmul.f32 %v211, %v223
        %v235 = vmul.f32 %v212, %v223
        %v236 = vmul.f32 %v213, %v223
        %v237 = vmul.f32 %v214, %v223
        %v238 = vmul.f32 %v215, %v223
        %v239 = vmul.f32 %v216, %v223
        %v240 = vmul.f32 %v217, %v223
        %241 = vadd.xlane.f32.xlu0 %v225
        %v242 = vpop.xlane.xlu0 %241
        %243 = vadd.xlane.f32.xlu0 %v226
        %v244 = vpop.xlane.xlu0 %243
        %245 = vadd.xlane.f32.xlu0 %v227
        %v246 = vpop.xlane.xlu0 %245
        %247 = vadd.xlane.f32.xlu0 %v228
        %v248 = vpop.xlane.xlu0 %247
        %249 = vadd.xlane.f32.xlu0 %v229
        %v250 = vpop.xlane.xlu0 %249
        %251 = vadd.xlane.f32.xlu0 %v230
        %v252 = vpop.xlane.xlu0 %251
        %253 = vadd.xlane.f32.xlu0 %v231
        %v254 = vpop.xlane.xlu0 %253
        %255 = vadd.xlane.f32.xlu0 %v232
        %v256 = vpop.xlane.xlu0 %255
        %257 = vadd.xlane.f32.xlu0 %v233
        %v258 = vpop.xlane.xlu0 %257
        %259 = vadd.xlane.f32.xlu0 %v234
        %v260 = vpop.xlane.xlu0 %259
        %261 = vadd.xlane.f32.xlu0 %v235
        %v262 = vpop.xlane.xlu0 %261
        %263 = vadd.xlane.f32.xlu0 %v236
        %v264 = vpop.xlane.xlu0 %263
        %265 = vadd.xlane.f32.xlu0 %v237
        %v266 = vpop.xlane.xlu0 %265
        %267 = vadd.xlane.f32.xlu0 %v238
        %v268 = vpop.xlane.xlu0 %267
        %269 = vadd.xlane.f32.xlu0 %v239
        %v270 = vpop.xlane.xlu0 %269
        %271 = vadd.xlane.f32.xlu0 %v240
        %v272 = vpop.xlane.xlu0 %271
        %s273 = sld [smem:[#allocation2]]
        %v274 = vstv %s273
        %v275 = vadd.f32 %v242, %v274
        %v276 = vadd.f32 %v244, %v274
        %v277 = vadd.f32 %v246, %v274
        %v278 = vadd.f32 %v248, %v274
        %v279 = vadd.f32 %v250, %v274
        %v280 = vadd.f32 %v252, %v274
        %v281 = vadd.f32 %v254, %v274
        %v282 = vadd.f32 %v256, %v274
        %v283 = vadd.f32 %v258, %v274
        %v284 = vadd.f32 %v260, %v274
        %v285 = vadd.f32 %v262, %v274
        %v286 = vadd.f32 %v264, %v274
        %v287 = vadd.f32 %v266, %v274
        %v288 = vadd.f32 %v268, %v274
        %v289 = vadd.f32 %v270, %v274
        %v290 = vadd.f32 %v272, %v274
        %v291 = vmul.f32 %v275, 0.5
        %v292 = vmul.f32 %v276, 0.5
        %v293 = vmul.f32 %v277, 0.5
        %v294 = vmul.f32 %v278, 0.5
        %v295 = vmul.f32 %v279, 0.5
        %v296 = vmul.f32 %v280, 0.5
        %v297 = vmul.f32 %v281, 0.5
        %v298 = vmul.f32 %v282, 0.5
        %v299 = vmul.f32 %v283, 0.5
        %v300 = vmul.f32 %v284, 0.5
        %v301 = vmul.f32 %v285, 0.5
        %v302 = vmul.f32 %v286, 0.5
        %v303 = vmul.f32 %v287, 0.5
        %v304 = vmul.f32 %v288, 0.5
        %v305 = vmul.f32 %v289, 0.5
        %v306 = vmul.f32 %v290, 0.5
        %v307 = vtanh.pop %v291
        %v308 = vtanh.pop %v292
        %v309 = vtanh.pop %v293
        %v310 = vtanh.pop %v294
        %v311 = vtanh.pop %v295
        %v312 = vtanh.pop %v296
        %v313 = vtanh.pop %v297
        %v314 = vtanh.pop %v298
        %v315 = vtanh.pop %v299
        %v316 = vtanh.pop %v300
        %v317 = vtanh.pop %v301
        %v318 = vtanh.pop %v302
        %v319 = vtanh.pop %v303
        %v320 = vtanh.pop %v304
        %v321 = vtanh.pop %v305
        %v322 = vtanh.pop %v306
        %v323 = vmul.f32 %v307, 0.5
        %v324 = vmul.f32 %v308, 0.5
        %v325 = vmul.f32 %v309, 0.5
        %v326 = vmul.f32 %v310, 0.5
        %v327 = vmul.f32 %v311, 0.5
        %v328 = vmul.f32 %v312, 0.5
        %v329 = vmul.f32 %v313, 0.5
        %v330 = vmul.f32 %v314, 0.5
        %v331 = vmul.f32 %v315, 0.5
        %v332 = vmul.f32 %v316, 0.5
        %v333 = vmul.f32 %v317, 0.5
        %v334 = vmul.f32 %v318, 0.5
        %v335 = vmul.f32 %v319, 0.5
        %v336 = vmul.f32 %v320, 0.5
        %v337 = vmul.f32 %v321, 0.5
        %v338 = vmul.f32 %v322, 0.5
        %v339 = vadd.f32 %v323, 0.5
        %v340 = vadd.f32 %v324, 0.5
        %v341 = vadd.f32 %v325, 0.5
        %v342 = vadd.f32 %v326, 0.5
        %v343 = vadd.f32 %v327, 0.5
        %v344 = vadd.f32 %v328, 0.5
        %v345 = vadd.f32 %v329, 0.5
        %v346 = vadd.f32 %v330, 0.5
        %v347 = vadd.f32 %v331, 0.5
        %v348 = vadd.f32 %v332, 0.5
        %v349 = vadd.f32 %v333, 0.5
        %v350 = vadd.f32 %v334, 0.5
        %v351 = vadd.f32 %v335, 0.5
        %v352 = vadd.f32 %v336, 0.5
        %v353 = vadd.f32 %v337, 0.5
        %v354 = vadd.f32 %v338, 0.5
        %vm355 = vcmask 7168
        %356 = vst.msk [vmem:[%s191] sm:$0xff] %vm355, %v339
        %357 = vst.msk [vmem:[%s191 + $0x8] sm:$0xff] %vm355, %v340
        %358 = vst.msk [vmem:[%s191 + $0x10] sm:$0xff] %vm355, %v341
        %359 = vst.msk [vmem:[%s191 + $0x18] sm:$0xff] %vm355, %v342
        %360 = vst.msk [vmem:[%s191 + $0x20] sm:$0xff] %vm355, %v343
        %361 = vst.msk [vmem:[%s191 + $0x28] sm:$0xff] %vm355, %v344
        %362 = vst.msk [vmem:[%s191 + $0x30] sm:$0xff] %vm355, %v345
        %363 = vst.msk [vmem:[%s191 + $0x38] sm:$0xff] %vm355, %v346
        %364 = vst.msk [vmem:[%s191 + $0x40] sm:$0xff] %vm355, %v347
        %365 = vst.msk [vmem:[%s191 + $0x48] sm:$0xff] %vm355, %v348
        %366 = vst.msk [vmem:[%s191 + $0x50] sm:$0xff] %vm355, %v349
        %367 = vst.msk [vmem:[%s191 + $0x58] sm:$0xff] %vm355, %v350
        %368 = vst.msk [vmem:[%s191 + $0x60] sm:$0xff] %vm355, %v351
        %369 = vst.msk [vmem:[%s191 + $0x68] sm:$0xff] %vm355, %v352
        %370 = vst.msk [vmem:[%s191 + $0x70] sm:$0xff] %vm355, %v353
        %371 = vst.msk [vmem:[%s191 + $0x78] sm:$0xff] %vm355, %v354
        %s372 = sand.u32 %s94, 1
        %s373 = sand.u32 %s94, 1
        %s374 = smul.addr %s373, 128
        %s375 = scalar_lea.vmem [#allocation5], %s374
        // Predicated region
        $region37: #{tpu_custom_call.1} parent=31 // pred_check
          %p376 = pneg %p104
        $region38: #{tpu_custom_call.1} parent=31 // pred_check_branch
          %378 = sbr.rel (%p376) target = $region40
        $region39: #{tpu_custom_call.1} parent=31 // pred_region
          %s379 = smul.u32 16, %s18
          %s380 = ssub.s32 25, %s379
          %p381 = scmp.lt.s32.totalorder %s380, 16
          %s382 = scalar_select %p381, %s380, 16
          %s383 = smul.u32 128, %s382
          %p384 = scmp.ne.s32.totalorder 0, %s383
          %s385 = smul.addr %s379, 8
          %s386 = scalar_lea.vmem %s3, %s385
          // Predicated region
          $region41: #{tpu_custom_call.1} parent=39 // pred_check
            %p387 = pneg %p384
          $region42: #{tpu_custom_call.1} parent=39 // pred_check_branch
            %389 = sbr.rel (%p387) target = $region44
          $region43: #{tpu_custom_call.1} parent=39 // pred_region
            // Predicated region
            $region45: #{tpu_custom_call.1} parent=43 // pred_check
              _
            $region46: #{tpu_custom_call.1} parent=43 // pred_check_branch
              %391 = sbr.rel (0) target = $region48
            $region47: #{tpu_custom_call.1} parent=43 // pred_region
              // Predicated region
              $region67: #{tpu_custom_call.1} parent=47 // pred_check
                _
              $region68: #{tpu_custom_call.1} parent=47 // pred_check_branch
                %470 = sbr.rel (0) target = $region70
              $region69: #{tpu_custom_call.1} parent=47 // pred_region
                %s471 = sshrl.u32 %s382, 4
                // While loop
                $region71: #{tpu_custom_call.1} parent=69 // loop_pre_header
                  _
                $region72: #{tpu_custom_call.1} parent=69 // loop_header
                  %s473 = sphi 0, %s475
                  %p474 = scmp.ge.s32.totalorder %s473, %s471
                  %s478 = sphi 0, %s515
                  %s479 = sphi %s375, %s518
                  %s480 = sphi %s386, %s519
                $region73: #{tpu_custom_call.1} parent=69 // loop_header_branch
                  %477 = sbr.rel (%p474) target = $region77
                $region74: #{tpu_custom_call.1} parent=69 // loop_body
                  %v481 = vld [vmem:[%s479] sm:$0xff]
                  %482 = vst [vmem:[%s480] sm:$0xff] %v481
                  %v483 = vld [vmem:[%s479 + $0x8] sm:$0xff]
                  %484 = vst [vmem:[%s480 + $0x8] sm:$0xff] %v483
                  %v485 = vld [vmem:[%s479 + $0x10] sm:$0xff]
                  %486 = vst [vmem:[%s480 + $0x10] sm:$0xff] %v485
                  %v487 = vld [vmem:[%s479 + $0x18] sm:$0xff]
                  %488 = vst [vmem:[%s480 + $0x18] sm:$0xff] %v487
                  %v489 = vld [vmem:[%s479 + $0x20] sm:$0xff]
                  %490 = vst [vmem:[%s480 + $0x20] sm:$0xff] %v489
                  %v491 = vld [vmem:[%s479 + $0x28] sm:$0xff]
                  %492 = vst [vmem:[%s480 + $0x28] sm:$0xff] %v491
                  %v493 = vld [vmem:[%s479 + $0x30] sm:$0xff]
                  %494 = vst [vmem:[%s480 + $0x30] sm:$0xff] %v493
                  %v495 = vld [vmem:[%s479 + $0x38] sm:$0xff]
                  %496 = vst [vmem:[%s480 + $0x38] sm:$0xff] %v495
                  %v497 = vld [vmem:[%s479 + $0x40] sm:$0xff]
                  %498 = vst [vmem:[%s480 + $0x40] sm:$0xff] %v497
                  %v499 = vld [vmem:[%s479 + $0x48] sm:$0xff]
                  %500 = vst [vmem:[%s480 + $0x48] sm:$0xff] %v499
                  %v501 = vld [vmem:[%s479 + $0x50] sm:$0xff]
                  %502 = vst [vmem:[%s480 + $0x50] sm:$0xff] %v501
                  %v503 = vld [vmem:[%s479 + $0x58] sm:$0xff]
                  %504 = vst [vmem:[%s480 + $0x58] sm:$0xff] %v503
                  %v505 = vld [vmem:[%s479 + $0x60] sm:$0xff]
                  %506 = vst [vmem:[%s480 + $0x60] sm:$0xff] %v505
                  %v507 = vld [vmem:[%s479 + $0x68] sm:$0xff]
                  %508 = vst [vmem:[%s480 + $0x68] sm:$0xff] %v507
                  %v509 = vld [vmem:[%s479 + $0x70] sm:$0xff]
                  %510 = vst [vmem:[%s480 + $0x70] sm:$0xff] %v509
                  %v511 = vld [vmem:[%s479 + $0x78] sm:$0xff]
                  %512 = vst [vmem:[%s480 + $0x78] sm:$0xff] %v511
                  %s513 = sadd.s32 1, %s478
                  %p514 = scmp.ge.s32.totalorder %s513, %s471
                  %s515 = scalar_select %p514, 0, %s513
                  %s516 = smul.u32 %s515, 128
                  %s517 = smul.u32 %s515, 128
                  %s518 = scalar_lea.vmem %s375, %s516 [#allocation5]
                  %s519 = scalar_lea.vmem %s386, %s517
                $region75: #{tpu_custom_call.1} parent=69 // loop_footer
                  %s475 = sadd.s32 %s473, 1
                $region76: #{tpu_custom_call.1} parent=69 // loop_footer_branch
                  %472 = sbr.rel target = $region72
                $region77: #{tpu_custom_call.1} parent=69 // loop_exit
                  _
                %s520 = sshrl.u32 %s382, 4
                %s521 = sand.u32 %s382, 15
                %s522 = smul.u32 %s520, 16
                %s523 = smul.u32 8, %s522
                %s524 = scalar_lea.vmem %s375, %s523 [#allocation5]
                %s525 = smul.u32 8, %s522
                %s526 = scalar_lea.vmem %s386, %s525
                // While loop
                $region78: #{tpu_custom_call.1} parent=69 // loop_pre_header
                  _
                $region79: #{tpu_custom_call.1} parent=69 // loop_header
                  %s528 = sphi 0, %s530
                  %p529 = scmp.ge.s32.totalorder %s528, %s521
                  %s533 = sphi 0, %s540
                  %s534 = sphi %s524, %s543
                  %s535 = sphi %s526, %s544
                $region80: #{tpu_custom_call.1} parent=69 // loop_header_branch
                  %532 = sbr.rel (%p529) target = $region84
                $region81: #{tpu_custom_call.1} parent=69 // loop_body
                  %v536 = vld [vmem:[%s534] sm:$0xff]
                  %537 = vst [vmem:[%s535] sm:$0xff] %v536
                  %s538 = sadd.s32 1, %s533
                  %p539 = scmp.ge.s32.totalorder %s538, %s521
                  %s540 = scalar_select %p539, 0, %s538
                  %s541 = smul.u32 %s540, 8
                  %s542 = smul.u32 %s540, 8
                  %s543 = scalar_lea.vmem %s524, %s541 [#allocation5]
                  %s544 = scalar_lea.vmem %s526, %s542
                $region82: #{tpu_custom_call.1} parent=69 // loop_footer
                  %s530 = sadd.s32 %s528, 1
                $region83: #{tpu_custom_call.1} parent=69 // loop_footer_branch
                  %527 = sbr.rel target = $region79
                $region84: #{tpu_custom_call.1} parent=69 // loop_exit
                  _
              $region70: #{tpu_custom_call.1} parent=47 // pred_fallthru
                _
              // Predicated region
              $region85: #{tpu_custom_call.1} parent=47 // pred_check
                _
              $region86: #{tpu_custom_call.1} parent=47 // pred_check_branch
                %546 = sbr.rel target = $region88
              $region87: #{tpu_custom_call.1} parent=47 // pred_region
                _
              $region88: #{tpu_custom_call.1} parent=47 // pred_fallthru
                _
            $region48: #{tpu_custom_call.1} parent=43 // pred_fallthru
              _
            // Predicated region
            $region49: #{tpu_custom_call.1} parent=43 // pred_check
              _
            $region50: #{tpu_custom_call.1} parent=43 // pred_check_branch
              %393 = sbr.rel target = $region52
            $region51: #{tpu_custom_call.1} parent=43 // pred_region
              %s395 = sshrl.u32 %s382, 4
              // While loop
              $region53: #{tpu_custom_call.1} parent=51 // loop_pre_header
                _
              $region54: #{tpu_custom_call.1} parent=51 // loop_header
                %s397 = sphi 0, %s399
                %p398 = scmp.ge.s32.totalorder %s397, %s395
                %s402 = sphi 0, %s439
                %s403 = sphi %s375, %s442
                %s404 = sphi %s386, %s443
              $region55: #{tpu_custom_call.1} parent=51 // loop_header_branch
                %401 = sbr.rel (%p398) target = $region59
              $region56: #{tpu_custom_call.1} parent=51 // loop_body
                %v405 = vld [vmem:[%s403] sm:$0xff]
                %406 = vst [vmem:[%s404] sm:$0xff] %v405
                %v407 = vld [vmem:[%s403 + $0x8] sm:$0xff]
                %408 = vst [vmem:[%s404 + $0x8] sm:$0xff] %v407
                %v409 = vld [vmem:[%s403 + $0x10] sm:$0xff]
                %410 = vst [vmem:[%s404 + $0x10] sm:$0xff] %v409
                %v411 = vld [vmem:[%s403 + $0x18] sm:$0xff]
                %412 = vst [vmem:[%s404 + $0x18] sm:$0xff] %v411
                %v413 = vld [vmem:[%s403 + $0x20] sm:$0xff]
                %414 = vst [vmem:[%s404 + $0x20] sm:$0xff] %v413
                %v415 = vld [vmem:[%s403 + $0x28] sm:$0xff]
                %416 = vst [vmem:[%s404 + $0x28] sm:$0xff] %v415
                %v417 = vld [vmem:[%s403 + $0x30] sm:$0xff]
                %418 = vst [vmem:[%s404 + $0x30] sm:$0xff] %v417
                %v419 = vld [vmem:[%s403 + $0x38] sm:$0xff]
                %420 = vst [vmem:[%s404 + $0x38] sm:$0xff] %v419
                %v421 = vld [vmem:[%s403 + $0x40] sm:$0xff]
                %422 = vst [vmem:[%s404 + $0x40] sm:$0xff] %v421
                %v423 = vld [vmem:[%s403 + $0x48] sm:$0xff]
                %424 = vst [vmem:[%s404 + $0x48] sm:$0xff] %v423
                %v425 = vld [vmem:[%s403 + $0x50] sm:$0xff]
                %426 = vst [vmem:[%s404 + $0x50] sm:$0xff] %v425
                %v427 = vld [vmem:[%s403 + $0x58] sm:$0xff]
                %428 = vst [vmem:[%s404 + $0x58] sm:$0xff] %v427
                %v429 = vld [vmem:[%s403 + $0x60] sm:$0xff]
                %430 = vst [vmem:[%s404 + $0x60] sm:$0xff] %v429
                %v431 = vld [vmem:[%s403 + $0x68] sm:$0xff]
                %432 = vst [vmem:[%s404 + $0x68] sm:$0xff] %v431
                %v433 = vld [vmem:[%s403 + $0x70] sm:$0xff]
                %434 = vst [vmem:[%s404 + $0x70] sm:$0xff] %v433
                %v435 = vld [vmem:[%s403 + $0x78] sm:$0xff]
                %436 = vst [vmem:[%s404 + $0x78] sm:$0xff] %v435
                %s437 = sadd.s32 1, %s402
                %p438 = scmp.ge.s32.totalorder %s437, %s395
                %s439 = scalar_select %p438, 0, %s437
                %s440 = smul.u32 %s439, 128
                %s441 = smul.u32 %s439, 128
                %s442 = scalar_lea.vmem %s375, %s440 [#allocation5]
                %s443 = scalar_lea.vmem %s386, %s441
              $region57: #{tpu_custom_call.1} parent=51 // loop_footer
                %s399 = sadd.s32 %s397, 1
              $region58: #{tpu_custom_call.1} parent=51 // loop_footer_branch
                %396 = sbr.rel target = $region54
              $region59: #{tpu_custom_call.1} parent=51 // loop_exit
                _
              %s444 = sshrl.u32 %s382, 4
              %s445 = sand.u32 %s382, 15
              %s446 = smul.u32 %s444, 16
              %s447 = smul.u32 8, %s446
              %s448 = scalar_lea.vmem %s375, %s447 [#allocation5]
              %s449 = smul.u32 8, %s446
              %s450 = scalar_lea.vmem %s386, %s449
              // While loop
              $region60: #{tpu_custom_call.1} parent=51 // loop_pre_header
                _
              $region61: #{tpu_custom_call.1} parent=51 // loop_header
                %s452 = sphi 0, %s454
                %p453 = scmp.ge.s32.totalorder %s452, %s445
                %s457 = sphi 0, %s464
                %s458 = sphi %s448, %s467
                %s459 = sphi %s450, %s468
              $region62: #{tpu_custom_call.1} parent=51 // loop_header_branch
                %456 = sbr.rel (%p453) target = $region66
              $region63: #{tpu_custom_call.1} parent=51 // loop_body
                %v460 = vld [vmem:[%s458] sm:$0xff]
                %461 = vst [vmem:[%s459] sm:$0xff] %v460
                %s462 = sadd.s32 1, %s457
                %p463 = scmp.ge.s32.totalorder %s462, %s445
                %s464 = scalar_select %p463, 0, %s462
                %s465 = smul.u32 %s464, 8
                %s466 = smul.u32 %s464, 8
                %s467 = scalar_lea.vmem %s448, %s465 [#allocation5]
                %s468 = scalar_lea.vmem %s450, %s466
              $region64: #{tpu_custom_call.1} parent=51 // loop_footer
                %s454 = sadd.s32 %s452, 1
              $region65: #{tpu_custom_call.1} parent=51 // loop_footer_branch
                %451 = sbr.rel target = $region61
              $region66: #{tpu_custom_call.1} parent=51 // loop_exit
                _
            $region52: #{tpu_custom_call.1} parent=43 // pred_fallthru
              _
          $region44: #{tpu_custom_call.1} parent=39 // pred_fallthru
            _
          %547 = vnop
        $region40: #{tpu_custom_call.1} parent=31 // pred_fallthru
          _
      $region32: #{tpu_custom_call.1} parent=5 // pred_fallthru
        _
      %p548 = scmp.le.s32.totalorder 2, %s13
      // Predicated region
      $region89: #{tpu_custom_call.1} parent=5 // pred_check
        %p549 = pneg %p548
      $region90: #{tpu_custom_call.1} parent=5 // pred_check_branch
        %551 = sbr.rel (%p549) target = $region92
      $region91: #{tpu_custom_call.1} parent=5 // pred_region
        %s552 = ssub.s32 %s13, 2
        // Predicated region
        $region93: #{tpu_custom_call.1} parent=91 // pred_check
          %p553 = pneg %p110
        $region94: #{tpu_custom_call.1} parent=91 // pred_check_branch
          %555 = sbr.rel (%p553) target = $region96
        $region95: #{tpu_custom_call.1} parent=91 // pred_region
          %s556 = sand.u32 %s95, 1
          %s557 = sand.u32 %s95, 1
          %s558 = smul.addr %s557, 128
          %s559 = scalar_lea.vmem [#allocation5], %s558
        $region96: #{tpu_custom_call.1} parent=91 // pred_fallthru
          _
      $region92: #{tpu_custom_call.1} parent=5 // pred_fallthru
        _
    $region6: #{tpu_custom_call.1} parent=1 // loop_footer
      %s17 = sadd.s32 1, %s13
    $region7: #{tpu_custom_call.1} parent=1 // loop_footer_branch
      %12 = sbr.rel target = $region3
    $region8: #{tpu_custom_call.1} parent=1 // loop_exit
      _
    %560 = vsyncpa [#allocation4], 1
    %s561 = scalar_lea.sflag [#allocation4], 1
    %562 = vsyncpa %s561, 1

</llo_original>
